<compile_context>
chip_gen: v6e
topology: v6e:2x2x1
jax: 0.10.0
libtpu: 0.0.40
codegen_flags: <defaults>
</compile_context>

<pallas_src>
import functools

import jax
import jax.numpy as jnp
from jax.experimental import pallas as pl
from jax.experimental.pallas import tpu as pltpu


def _round_up(x, m):
    return ((x + m - 1) // m) * m


def _vmem_budget_bytes():
    """Per-kernel scoped-VMEM request derived from the chip's physical capacity."""
    try:
        cap = int(pltpu.get_tpu_info().vmem_capacity_bytes)
    except Exception:
        cap = 64 * 1024 * 1024            # conservative (v7x-sized) fallback
    # 3/4 of physical, capped at 96 MiB: ~96 MiB on v5e/v6e (128 MiB), 48 MiB on v7x.
    return min((cap // 4) * 3, 96 * 1024 * 1024)


# ----------------------------------------------------------------------------
# Banded path (W >= 128): only the 8-aligned row band and 128-lane column band
# intersecting the patch window are touched.
# ----------------------------------------------------------------------------
def _banded_kernel(img_ref, pad_ref, out_ref, *, row0, col0, row_tile, col_tile,
                   r_lo, r_hi, c_lo, c_hi):
    """One (batch-tile, row-stripe, col-stripe) grid step.

    img_ref / out_ref: (Bt, C, row_tile, col_tile)  image block (out aliases img in HBM)
    pad_ref:           (C, row_tile, col_tile)      matching block of the clamped patch band
    """
    h = pl.program_id(1)
    w = pl.program_id(2)
    r_base = row0 + h * row_tile
    c_base = col0 + w * col_tile
    rows = r_base + jax.lax.broadcasted_iota(jnp.int32, (row_tile, col_tile), 0)
    cols = c_base + jax.lax.broadcasted_iota(jnp.int32, (row_tile, col_tile), 1)
    # Coordinate placement mask (exact; no reliance on the 1e-6 clamp sentinel).
    inside = (rows >= r_lo) & (rows < r_hi) & (cols >= c_lo) & (cols < c_hi)
    out_ref[...] = jnp.where(inside[None, None], pad_ref[...][None], img_ref[...])


def _apply_banded(img, patch_vis, r_lo, r_hi, c_lo, c_hi):
    B, C, H, W = img.shape
    itemsize = img.dtype.itemsize
    p_rows = r_hi - r_lo
    p_cols = c_hi - c_lo

    # Row stripes: sublane aligned, tightly bracketing [r_lo, r_hi).  Grow the
    # stripe for tall patches so per-step DMAs stay large (alignment waste is
    # bounded by 2*(row_tile-1) rows, small relative to p in that regime).
    row_tile = 8
    while row_tile < 32 and p_rows >= 8 * row_tile and H >= 2 * row_tile:
        row_tile *= 2
    col_tile = 128

    band_r0 = (r_lo // row_tile) * row_tile
    band_r1 = _round_up(r_hi, row_tile)          # may exceed H; Pallas masks edge blocks
    band_c0 = (c_lo // col_tile) * col_tile
    band_c1 = _round_up(c_hi, col_tile)          # may exceed W; Pallas masks edge blocks
    n_band = (band_r1 - band_r0) // row_tile
    n_cols = (band_c1 - band_c0) // col_tile
    row_block0 = band_r0 // row_tile
    col_block0 = band_c0 // col_tile

    # Tiny band-aligned plane holding the clamped patch (zeros elsewhere; those
    # zeros are never selected -- the mask is coordinate based).
    band = jnp.zeros((C, band_r1 - band_r0, band_c1 - band_c0), img.dtype)
    band = band.at[:, r_lo - band_r0:r_lo - band_r0 + p_rows,
                   c_lo - band_c0:c_lo - band_c0 + p_cols].set(patch_vis)

    # Batch tile sized to this chip's VMEM: 2x-buffered image in + aliased out
    # (4x block) plus the 2x-buffered pad block, with headroom.
    per_b_block = C * row_tile * col_tile * itemsize
    pad_block = C * row_tile * col_tile * itemsize
    vmem_limit = _vmem_budget_bytes()
    budget = max(vmem_limit - 4 * pad_block - (2 << 20), 1 << 20)
    batch_tile = int(max(1, min(B, budget // (4 * per_b_block))))
    n_b = pl.cdiv(B, batch_tile)

    img_spec = pl.BlockSpec(
        (batch_tile, C, row_tile, col_tile),
        lambda b, h, w: (b, 0, row_block0 + h, col_block0 + w))
    pad_spec = pl.BlockSpec(
        (C, row_tile, col_tile), lambda b, h, w: (0, h, w))

    touched = 2 * B * C * (band_r1 - band_r0) * (band_c1 - band_c0) * itemsize
    kernel = functools.partial(
        _banded_kernel, row0=band_r0, col0=band_c0,
        row_tile=row_tile, col_tile=col_tile,
        r_lo=r_lo, r_hi=r_hi, c_lo=c_lo, c_hi=c_hi)

    return pl.pallas_call(
        kernel,
        out_shape=jax.ShapeDtypeStruct(img.shape, img.dtype),
        grid_spec=pltpu.PrefetchScalarGridSpec(
            num_scalar_prefetch=0,
            # Batch leading so megacore (v7x: 2 TCs) shards over real work.
            grid=(n_b, n_band, n_cols),
            in_specs=[img_spec, pad_spec],
            out_specs=img_spec),
        # Blocks outside the band are never read or written; they keep the input
        # values through the alias (+ donation at the jit boundary).
        input_output_aliases={0: 0},
        compiler_params=pltpu.CompilerParams(
            dimension_semantics=("parallel", "parallel", "parallel"),
            vmem_limit_bytes=vmem_limit),
        cost_estimate=pl.CostEstimate(
            flops=touched // (2 * itemsize), transcendentals=0,
            bytes_accessed=touched),
    )(img, band)


# ----------------------------------------------------------------------------
# Lane-dense path for small images (W < 128): flatten to (B, C*H*W) so the
# output block's last dim is lane-dense; whole image per block.
# ----------------------------------------------------------------------------
def _flat_kernel(img_ref, pad_ref, msk_ref, out_ref):
    """img_ref/out_ref: (Bt, N); pad_ref/msk_ref: (1, N). Lane-dense select."""
    out_ref[...] = jnp.where(msk_ref[...] > 0.5, pad_ref[...], img_ref[...])


def _apply_flat(img, patch_vis, r_lo, r_hi, c_lo, c_hi):
    B, C, H, W = img.shape
    itemsize = img.dtype.itemsize
    N = C * H * W

    plane = jnp.zeros((C, H, W), img.dtype).at[:, r_lo:r_hi, c_lo:c_hi].set(patch_vis)
    mask = jnp.zeros((C, H, W), img.dtype).at[:, r_lo:r_hi, c_lo:c_hi].set(1.0)
    plane = plane.reshape(1, N)
    mask = mask.reshape(1, N)
    img_flat = img.reshape(B, N)

    vmem_limit = _vmem_budget_bytes()
    budget = max(vmem_limit - 4 * 2 * N * itemsize - (2 << 20), 1 << 20)
    batch_tile = int(max(1, min(B, budget // (4 * N * itemsize))))
    if batch_tile < B:
        # Keep the sublane dim of the block 8-aligned unless it is the full batch.
        batch_tile = min(B, max(8, (batch_tile // 8) * 8))
    n_b = pl.cdiv(B, batch_tile)

    img_spec = pl.BlockSpec((batch_tile, N), lambda b: (b, 0))
    one_spec = pl.BlockSpec((1, N), lambda b: (0, 0))   # resident across batch tiles

    out = pl.pallas_call(
        _flat_kernel,
        out_shape=jax.ShapeDtypeStruct((B, N), img.dtype),
        grid_spec=pltpu.PrefetchScalarGridSpec(
            num_scalar_prefetch=0,
            grid=(n_b,),
            in_specs=[img_spec, one_spec, one_spec],
            out_specs=img_spec),
        input_output_aliases={0: 0},
        compiler_params=pltpu.CompilerParams(
            dimension_semantics=("parallel",),
            vmem_limit_bytes=vmem_limit),
        cost_estimate=pl.CostEstimate(
            flops=B * N, transcendentals=0,
            bytes_accessed=2 * B * N * itemsize),
    )(img_flat, plane, mask)
    return out.reshape(B, C, H, W)


# ----------------------------------------------------------------------------
# Public wrapper
# ----------------------------------------------------------------------------
def patch_random_applier(img_batch, adv_patch, bboxes_batch):
    """JAX/Pallas equivalent of PatchRandomApplier.forward with cfg.TRANSFORM = [].

    img_batch:    (B, C, H, W)
    adv_patch:    (C, p, p)
    bboxes_batch: (B, L, 6)   (only L is used; identity placement)
    """
    B, C, H, W = img_batch.shape
    L = bboxes_batch.shape[1]
    p = adv_patch.shape[-1]

    # PyTorch: zero labels -> zero PatchApplier iterations -> image unchanged.
    if L == 0 or B == 0:
        return img_batch

    # ConstantPad2d offsets, same rounding as the PyTorch module (both offsets
    # derived from W, faithfully reproducing the original code; the module
    # implicitly assumes square-ish images with p <= W).
    pad_size = (W - p) / 2
    left = int(pad_size + 0.5)
    top = int(pad_size + 0.5)

    # Visible patch window inside the image.
    r_lo, r_hi = max(top, 0), min(top + p, H)
    c_lo, c_hi = max(left, 0), min(left + p, W)
    if r_hi <= r_lo or c_hi <= c_lo:
        return img_batch

    patch = jnp.clip(adv_patch, 1e-6, 0.99999).astype(img_batch.dtype)
    patch_vis = patch[:, r_lo - top:r_hi - top, c_lo - left:c_hi - left]

    if W < 128 or H < 8:
        return _apply_flat(img_batch, patch_vis, r_lo, r_hi, c_lo, c_hi)
    return _apply_banded(img_batch, patch_vis, r_lo, r_hi, c_lo, c_hi)


def _reference(img_batch, adv_patch, bboxes_batch):
    """Pure-JAX reference of the same (identity-transform) forward pass."""
    B, C, H, W = img_batch.shape
    L = bboxes_batch.shape[1]
    p = adv_patch.shape[-1]
    if L == 0:
        return img_batch
    pad_size = (W - p) / 2
    left = int(pad_size + 0.5)
    top = int(pad_size + 0.5)
    patch = jnp.clip(adv_patch, 1e-6, 0.99999).astype(img_batch.dtype)
    padded = jnp.zeros((C, H, W), img_batch.dtype)
    padded = padded.at[:, top:top + p, left:left + p].set(patch)
    out = img_batch
    for _ in range(L):
        out = jnp.where(padded[None] == 0.0, out, padded[None])
    return out


if __name__ == "__main__":
    key = jax.random.PRNGKey(0)

    def run_case(B, C, H, W, p, L, case_key):
        k_img, k_patch, k_box = jax.random.split(case_key, 3)
        img = jax.random.uniform(k_img, (B, C, H, W), dtype=jnp.float32)
        patch = jax.random.uniform(k_patch, (C, p, p), dtype=jnp.float32)
        boxes = jax.random.uniform(k_box, (B, L, 6), dtype=jnp.float32)

        ref = jax.block_until_ready(_reference(img, patch, boxes))

        # Donate the image batch so input_output_aliases={0: 0} aliases the HBM
        # buffer in place (untouched rows/cols are neither read nor written).
        fn = jax.jit(patch_random_applier, donate_argnums=(0,))
        out = jax.block_until_ready(fn(img, patch, boxes))

        assert out.shape == (B, C, H, W)
        assert jnp.allclose(out, ref, atol=1e-6), "mismatch vs reference"

    k1, k2 = jax.random.split(key)
    # Small image -> lane-dense flattened path.
    run_case(B=2, C=3, H=16, W=16, p=8, L=8, case_key=k1)
    # Larger image -> row/column banded path (column band skips untouched
    # 128-lane blocks; rows outside the 8-aligned band are never touched).
    run_case(B=2, C=3, H=320, W=320, p=48, L=8, case_key=k2)

    print("KERNEL_OK")
</pallas_src>

<mosaic_0001>
module attributes {stable_mosaic.version = 11 : i64} {
  func.func @_flat_kernel(%arg0: i32, %arg1: memref<2x768xf32, #tpu.memory_space<vmem>>, %arg2: memref<1x768xf32, #tpu.memory_space<vmem>>, %arg3: memref<1x768xf32, #tpu.memory_space<vmem>>, %arg4: memref<2x768xf32, #tpu.memory_space<vmem>>) attributes {dimension_semantics = [#tpu.dimension_semantics<parallel>], iteration_bounds = array<i64: 1>, scalar_prefetch = 0 : i64, scratch_operands = 0 : i64, tpu.core_type = #tpu.core_type<tc>, window_params = [{transform_indices = @transform_0, window_bounds = array<i64: 2, 768>}, {pipeline_mode = #tpu.pipeline_mode<synchronous>, transform_indices = @transform_1, window_bounds = array<i64: 1, 768>}, {pipeline_mode = #tpu.pipeline_mode<synchronous>, transform_indices = @transform_2, window_bounds = array<i64: 1, 768>}, {transform_indices = @transform_3, window_bounds = array<i64: 2, 768>}]} {
    %c0 = arith.constant 0 : index
    %c0_0 = arith.constant 0 : index
    %0 = vector.load %arg3[%c0, %c0_0] : memref<1x768xf32, #tpu.memory_space<vmem>>, vector<1x768xf32>
    %cst = arith.constant 5.000000e-01 : f32
    %1 = vector.broadcast %cst : f32 to vector<1x768xf32>
    %2 = arith.cmpf ogt, %0, %1 : vector<1x768xf32>
    %c0_1 = arith.constant 0 : index
    %c0_2 = arith.constant 0 : index
    %3 = vector.load %arg2[%c0_1, %c0_2] : memref<1x768xf32, #tpu.memory_space<vmem>>, vector<1x768xf32>
    %c0_3 = arith.constant 0 : index
    %c0_4 = arith.constant 0 : index
    %4 = vector.load %arg1[%c0_3, %c0_4] : memref<2x768xf32, #tpu.memory_space<vmem>>, vector<2x768xf32>
    %5 = vector.shape_cast %2 : vector<1x768xi1> to vector<1x768xi1>
    %6 = vector.broadcast %5 : vector<1x768xi1> to vector<2x768xi1>
    %7 = vector.shape_cast %3 : vector<1x768xf32> to vector<1x768xf32>
    %8 = vector.broadcast %7 : vector<1x768xf32> to vector<2x768xf32>
    %9 = arith.select %6, %8, %4 : vector<2x768xi1>, vector<2x768xf32>
    %c0_5 = arith.constant 0 : index
    %c0_6 = arith.constant 0 : index
    %10 = vector.load %arg4[%c0_5, %c0_6] : memref<2x768xf32, #tpu.memory_space<vmem>>, vector<2x768xf32>
    tpu.vector_store %arg4[%c0_5, %c0_6], %9 {strides = array<i32>} : memref<2x768xf32, #tpu.memory_space<vmem>>, vector<2x768xf32>,
    return
  }
  func.func @transform_0(%arg0: i32) -> (i32, i32) {
    %c0_i32 = arith.constant 0 : i32
    %c0_i32_0 = arith.constant 0 : i32
    return %arg0, %c0_i32 : i32, i32
  }
  func.func @transform_1(%arg0: i32) -> (i32, i32) {
    %c0_i32 = arith.constant 0 : i32
    %c0_i32_0 = arith.constant 0 : i32
    %c0_i32_1 = arith.constant 0 : i32
    return %c0_i32, %c0_i32_0 : i32, i32
  }
  func.func @transform_2(%arg0: i32) -> (i32, i32) {
    %c0_i32 = arith.constant 0 : i32
    %c0_i32_0 = arith.constant 0 : i32
    %c0_i32_1 = arith.constant 0 : i32
    return %c0_i32, %c0_i32_0 : i32, i32
  }
  func.func @transform_3(%arg0: i32) -> (i32, i32) {
    %c0_i32 = arith.constant 0 : i32
    %c0_i32_0 = arith.constant 0 : i32
    return %arg0, %c0_i32 : i32, i32
  }
}

</mosaic_0001>

<llo_original>
// kernel: patch_random_applier.1
$region0: #{patch_random_applier.1}
  #allocation0 [shape = 'u32[]', space=smem, size = 0x4, offset = 0x4, fixed_abs, tag = 'smem constant byte address 0x4 - core index']
  #allocation1 [shape = 'u32[144,128]{1,0:T(1,128)}', space=vmem, size = 0x12000, scoped, tag = 'internal scratch']
  %s0 = inlined_call_operand.vmem [shape: f32[2,768], index: 0, kind: input, shape index: {}, may-alias: {0,3}]
  %s1 = inlined_call_operand.vmem [shape: f32[1,768], index: 1, kind: input, shape index: {}]
  %s2 = inlined_call_operand.vmem [shape: f32[1,768], index: 2, kind: input, shape index: {}]
  %s3 = inlined_call_operand.vmem [shape: f32[2,768], index: 3, kind: output, shape index: {}, may-alias: {0,3}]
  %s4 = sld [smem:[#allocation0]]
  $region22: #{patch_random_applier.1} parent=0
    _
  %s6 = ssub.s32 1, %s4
  %s7 = scalar_select 0, %s6, %s4
  // Predicated region
  $region2: #{patch_random_applier.1} parent=0 // pred_check
    _
  $region3: #{patch_random_applier.1} parent=0 // pred_check_branch
    %9 = sbr.rel (0) target = $region5
  $region4: #{patch_random_applier.1} parent=0 // pred_region
    _
  $region5: #{patch_random_applier.1} parent=0 // pred_fallthru
    _
  // Predicated region
  $region6: #{patch_random_applier.1} parent=0 // pred_check
    _
  $region7: #{patch_random_applier.1} parent=0 // pred_check_branch
    %11 = sbr.rel (0) target = $region9
  $region8: #{patch_random_applier.1} parent=0 // pred_region
    _
  $region9: #{patch_random_applier.1} parent=0 // pred_fallthru
    _
  // Predicated region
  $region10: #{patch_random_applier.1} parent=0 // pred_check
    _
  $region11: #{patch_random_applier.1} parent=0 // pred_check_branch
    %13 = sbr.rel (0) target = $region13
  $region12: #{patch_random_applier.1} parent=0 // pred_region
    _
  $region13: #{patch_random_applier.1} parent=0 // pred_fallthru
    _
  %v14 = vld [vmem:[%s2] sm:$0x3f]
  %vm15 = vcmp.gt.f32.partialorder %v14, 0.5
  %v16 = vld [vmem:[%s1] sm:$0x3f]
  %v17 = vld [vmem:[%s0] sm:$0xff]
  %v18 = vld [vmem:[%s0 + $0x8] sm:$0xf]
  %v19 = vsel %vm15, 1, 0
  %v20 = vlaneseq
  %v21 = vshrl.u32 %v20, 7
  %v22 = vsub.s32 0, %v21
  %v23 = vrot.slane %v19, %v22
  %v24 = vlaneseq
  %v25 = vshrl.u32 %v24, 7
  %v26 = vsub.s32 1, %v25
  %v27 = vrot.slane %v19, %v26
  %v28 = vlaneseq
  %v29 = vshrl.u32 %v28, 7
  %v30 = vsub.s32 2, %v29
  %v31 = vrot.slane %v19, %v30
  %v32 = vlaneseq
  %v33 = vshrl.u32 %v32, 7
  %v34 = vsub.s32 3, %v33
  %v35 = vrot.slane %v19, %v34
  %v36 = vlaneseq
  %v37 = vshrl.u32 %v36, 7
  %v38 = vsub.s32 4, %v37
  %v39 = vrot.slane %v19, %v38
  %v40 = vlaneseq
  %v41 = vshrl.u32 %v40, 7
  %v42 = vsub.s32 5, %v41
  %v43 = vrot.slane %v19, %v42
  %vm44 = vcmp.eq.s32.totalorder %v23, 1
  %vm45 = vcmp.eq.s32.totalorder %v27, 1
  %vm46 = vcmp.eq.s32.totalorder %v31, 1
  %vm47 = vcmp.eq.s32.totalorder %v35, 1
  %vm48 = vcmp.eq.s32.totalorder %v39, 1
  %vm49 = vcmp.eq.s32.totalorder %v43, 1
  %v51 = vlaneseq
  %v52 = vshrl.u32 %v51, 7
  %v53 = vsub.s32 0, %v52
  %v54 = vrot.slane %v16, %v53
  %v55 = vlaneseq
  %v56 = vshrl.u32 %v55, 7
  %v57 = vsub.s32 1, %v56
  %v58 = vrot.slane %v16, %v57
  %v59 = vlaneseq
  %v60 = vshrl.u32 %v59, 7
  %v61 = vsub.s32 2, %v60
  %v62 = vrot.slane %v16, %v61
  %v63 = vlaneseq
  %v64 = vshrl.u32 %v63, 7
  %v65 = vsub.s32 3, %v64
  %v66 = vrot.slane %v16, %v65
  %v67 = vlaneseq
  %v68 = vshrl.u32 %v67, 7
  %v69 = vsub.s32 4, %v68
  %v70 = vrot.slane %v16, %v69
  %v71 = vlaneseq
  %v72 = vshrl.u32 %v71, 7
  %v73 = vsub.s32 5, %v72
  %v74 = vrot.slane %v16, %v73
  %v83 = vcombine.high %v17, %v17
  %v85 = vunpack.c.l.s4 1983009808
  %v86 = vunpack.c.0.s8 %v85
  %v87 = vlaneseq
  %v88 = vshrl.u32 %v87, 7
  %v89 = vsub.s32 %v86, %v88
  %v90 = vrot.slane %v17, %v89
  %v92 = vunpack.c.l.s4 1983009808
  %v93 = vunpack.c.0.s8 %v92
  %v94 = vlaneseq
  %v95 = vshrl.u32 %v94, 7
  %v96 = vsub.s32 %v93, %v95
  %v97 = vrot.slane %v83, %v96
  %v98 = vcombine.high %v90, %v90
  %v99 = vcombine.high %v97, %v97
  %v101 = vunpack.c.l.s4 1983009808
  %v102 = vunpack.c.0.s8 %v101
  %v103 = vlaneseq
  %v104 = vshrl.u32 %v103, 7
  %v105 = vsub.s32 %v102, %v104
  %v106 = vrot.slane %v18, %v105
  %v107 = vcombine.high %v106, %v106
  %v114 = vsel %vm44, %v54, %v90
  %v115 = vsel %vm45, %v58, %v98
  %v116 = vsel %vm46, %v62, %v97
  %v117 = vsel %vm47, %v66, %v99
  %v118 = vsel %vm48, %v70, %v106
  %v119 = vsel %vm49, %v74, %v107
  %v126 = vcombine.low %v114, %v115
  %v127 = vcombine.low %v116, %v117
  %v129 = vunpack.c.l.s4 1983009808
  %v130 = vunpack.c.0.s8 %v129
  %v131 = vlaneseq
  %v132 = vshrl.u32 %v131, 7
  %v133 = vsub.s32 %v130, %v132
  %v134 = vrot.slane %v126, %v133
  %v136 = vunpack.c.l.s4 1983009808
  %v137 = vunpack.c.0.s8 %v136
  %v138 = vlaneseq
  %v139 = vshrl.u32 %v138, 7
  %v140 = vsub.s32 %v137, %v139
  %v141 = vrot.slane %v127, %v140
  %v142 = vcombine.low %v134, %v141
  %v143 = vcombine.low %v118, %v119
  %v145 = vunpack.c.l.s4 1983009808
  %v146 = vunpack.c.0.s8 %v145
  %v147 = vlaneseq
  %v148 = vshrl.u32 %v147, 7
  %v149 = vsub.s32 %v146, %v148
  %v150 = vrot.slane %v143, %v149
  %153 = vst [vmem:[%s3] sm:$0xff] %v142
  %154 = vst [vmem:[%s3 + $0x8] sm:$0xf] %v150
  // Predicated region
  $region14: #{patch_random_applier.1} parent=0 // pred_check
    _
  $region15: #{patch_random_applier.1} parent=0 // pred_check_branch
    %156 = sbr.rel (0) target = $region17
  $region16: #{patch_random_applier.1} parent=0 // pred_region
    _
  $region17: #{patch_random_applier.1} parent=0 // pred_fallthru
    _
  // Predicated region
  $region18: #{patch_random_applier.1} parent=0 // pred_check
    _
  $region19: #{patch_random_applier.1} parent=0 // pred_check_branch
    %158 = sbr.rel (0) target = $region21
  $region20: #{patch_random_applier.1} parent=0 // pred_region
    _
  $region21: #{patch_random_applier.1} parent=0 // pred_fallthru
    _

</llo_original>
